<compile_context>
chip_gen: v5e
topology: v5e:2x2
jax: 0.10.0
libtpu: 0.0.40
codegen_flags: <defaults>
</compile_context>

<pallas_src>
import math
from functools import partial

import jax
import jax.numpy as jnp
from jax.experimental import pallas as pl
from jax.experimental.pallas import tpu as pltpu


# ---------------------------------------------------------------------------
# Stage 1: fused QKV projection -> head-major q (pre-scaled, bf16), k^T, v
# ---------------------------------------------------------------------------
def qkv_proj_kernel(x_ref, wqkv_ref, bqkv_ref, q_ref, kt_ref, v_ref,
                    *, num_heads, head_dim, scale):
    # x_ref: (ts, E) f32; wqkv_ref: (E, 3E) bf16; bqkv_ref: (1, 3E) f32
    # q_ref/v_ref: (H, ts, D) bf16; kt_ref: (H, D, ts) bf16
    E = num_heads * head_dim
    x = x_ref[...].astype(wqkv_ref.dtype)                     # bf16 MXU operands
    qkv = jnp.dot(x, wqkv_ref[...],
                  preferred_element_type=jnp.float32) + bqkv_ref[...]   # (ts, 3E)
    # Column order of Wqkv output is (three, head, d), matching the PyTorch
    # rearrange '... (three h d) -> ... three h d'.
    for h in range(num_heads):                                # small static unroll
        lo = h * head_dim
        q_ref[h] = (qkv[:, lo:lo + head_dim] * scale).astype(q_ref.dtype)
        # K stored pre-transposed (D, ts): one XLU transpose here instead of a
        # relayout per inner attention step in stage 2.
        kt_ref[h] = qkv[:, E + lo:E + lo + head_dim].T.astype(kt_ref.dtype)
        v_ref[h] = qkv[:, 2 * E + lo:2 * E + lo + head_dim].astype(v_ref.dtype)


# ---------------------------------------------------------------------------
# Stage 2: flash attention over all heads + single fused output projection
# ---------------------------------------------------------------------------
def flash_attn_out_kernel(q_ref, kt_ref, v_ref, wout_ref, bout_ref, o_ref,
                          m_s, l_s, acc_s):
    # q_ref: (H, tq, D) bf16 pre-scaled; kt_ref: (H, D, tk) bf16; v_ref: (H, tk, D) bf16
    # wout_ref: (E, E) bf16 resident; bout_ref: (1, E) f32; o_ref: (tq, E)
    # scratch: m_s / l_s: (H, tq, 1) f32; acc_s: (H, tq, D) f32
    ki = pl.program_id(2)
    num_kv = pl.num_programs(2)
    num_heads = q_ref.shape[0]

    @pl.when(ki == 0)
    def _():
        m_s[...] = jnp.full(m_s.shape, -jnp.inf, dtype=m_s.dtype)
        l_s[...] = jnp.zeros(l_s.shape, dtype=l_s.dtype)
        acc_s[...] = jnp.zeros(acc_s.shape, dtype=acc_s.dtype)

    for h in range(num_heads):                     # static unroll over heads
        # (tq, D) x (D, tk): native contraction, K already transposed in stage 1.
        s = jnp.dot(q_ref[h], kt_ref[h], preferred_element_type=jnp.float32)
        m_prev = m_s[h]
        m_new = jnp.maximum(m_prev, jnp.max(s, axis=-1, keepdims=True))
        alpha = jnp.exp(m_prev - m_new)
        # TODO(synk): on v6e/v7x the exp could be done at bf16 (inner loop is
        # EUP-bound); kept fp32 so the same kernel is correct on v5e.
        p = jnp.exp(s - m_new)
        l_s[h] = alpha * l_s[h] + jnp.sum(p, axis=-1, keepdims=True)
        acc_s[h] = alpha * acc_s[h] + jnp.dot(
            p.astype(v_ref.dtype), v_ref[h], preferred_element_type=jnp.float32)
        m_s[h] = m_new

    @pl.when(ki == num_kv - 1)
    def _():
        # Assemble the (tq, E) context once and do ONE full-K (K = E) output
        # projection against the resident Wout (no per-head Wout re-DMA).
        ctx = jnp.concatenate(
            [acc_s[h] * pl.reciprocal(l_s[h], approx=True)
             for h in range(num_heads)], axis=-1).astype(wout_ref.dtype)
        o_ref[...] = (jnp.dot(ctx, wout_ref[...], preferred_element_type=jnp.float32)
                      + bout_ref[...]).astype(o_ref.dtype)


# ---------------------------------------------------------------------------
# Wrapper
# ---------------------------------------------------------------------------
def _pick_tile(n, target, *, lane=False):
    """Largest MXU-friendly divisor of n that is <= target.

    Prefers multiples of 128.  For lane-mapped axes (which must be a multiple
    of 128 or the full dim) falls back to the full dim; otherwise falls back
    to multiples of 8."""
    t = min(n, target)
    c = (t // 128) * 128
    while c >= 128:
        if n % c == 0:
            return c
        c -= 128
    if lane:
        return n
    c = (t // 8) * 8
    while c >= 8:
        if n % c == 0:
            return c
        c -= 8
    return n   # TODO(synk): pad-or-assert path for awkward sequence lengths


def _chip_config():
    """Per-generation VMEM cap / tile targets: 512-tiles & ~96 MiB on
    v5e/v6e (128 MiB physical VMEM); 256-tiles & 48 MiB headroom on v7x
    (64 MiB) and unknown chips."""
    try:
        kind = jax.devices()[0].device_kind.lower()
    except Exception:
        kind = ""
    if any(t in kind for t in ("v5 lite", "v5e", "v5p", "v6", "trillium")):
        return 96 * 1024 * 1024, 512, 256, 512
    return 48 * 1024 * 1024, 256, 256, 256


def mha_forward(x, wqkv_t, bqkv, wout_t, bout, num_heads):
    """x: (B, S, E) f32.  wqkv_t: (E, 3E), wout_t: (E, E) (pre-transposed,
    i.e. (in_features, out_features)).  Biases: (1, 3E) / (1, E)."""
    B, S, E = x.shape
    H = num_heads
    D = E // H
    scale = 1.0 / math.sqrt(D)

    vmem_cap, ts_t, tq_t, tk_t = _chip_config()
    ts = _pick_tile(S, ts_t, lane=True)   # stage-1 seq tile (lane dim of k^T out)
    tq = _pick_tile(S, tq_t)
    tk = _pick_tile(S, tk_t, lane=True)

    # bf16 MXU operands (fp32 accumulation in-kernel); halves resident weight
    # VMEM and the q/k/v HBM round trip between the two stages.
    wqkv_bf = wqkv_t.astype(jnp.bfloat16)
    wout_bf = wout_t.astype(jnp.bfloat16)

    # ---- Stage 1: QKV projection, head-major layout, q pre-scaled, K^T ------
    flops1 = 2 * B * S * E * 3 * E
    bytes1 = B * S * E * 4 + E * 3 * E * 2 + 3 * E * 4 + 3 * B * S * E * 2
    proj = partial(qkv_proj_kernel, num_heads=H, head_dim=D, scale=scale)
    hm_spec = pl.BlockSpec((None, H, ts, D), lambda b, si: (b, 0, si, 0))   # q / v
    kt_spec = pl.BlockSpec((None, H, D, ts), lambda b, si: (b, 0, 0, si))   # k^T
    q, kt, v = pl.pallas_call(
        proj,
        out_shape=(jax.ShapeDtypeStruct((B, H, S, D), jnp.bfloat16),
                   jax.ShapeDtypeStruct((B, H, D, S), jnp.bfloat16),
                   jax.ShapeDtypeStruct((B, H, S, D), jnp.bfloat16)),
        grid_spec=pltpu.PrefetchScalarGridSpec(
            num_scalar_prefetch=0,
            grid=(B, S // ts),
            in_specs=[
                pl.BlockSpec((None, ts, E), lambda b, si: (b, si, 0)),   # x tile
                # TODO(synk): at production E add pipeline_mode=pl.Buffered(1)
                # here so the resident bf16 weights are not double-buffered.
                pl.BlockSpec((E, 3 * E), lambda b, si: (0, 0)),          # Wqkv resident
                pl.BlockSpec((1, 3 * E), lambda b, si: (0, 0)),          # b_qkv resident
            ],
            out_specs=(hm_spec, kt_spec, hm_spec),
        ),
        compiler_params=pltpu.CompilerParams(
            dimension_semantics=("parallel", "parallel"),
            vmem_limit_bytes=vmem_cap),
        cost_estimate=pl.CostEstimate(flops=flops1, transcendentals=0,
                                      bytes_accessed=bytes1),
    )(x, wqkv_bf, bqkv)

    # ---- Stage 2: flash attention (all heads per block) + fused out proj ----
    n_qt = S // tq
    flops2 = 4 * B * S * S * E + 2 * B * S * E * E
    trans2 = B * H * S * S
    bytes2 = (B * S * E * 2                       # q read once
              + 2 * n_qt * B * S * E * 2          # k^T / v re-streamed per q tile
              + E * E * 2 + E * 4                 # resident Wout / b_out
              + B * S * E * 4)                    # output
    out = pl.pallas_call(
        flash_attn_out_kernel,
        out_shape=jax.ShapeDtypeStruct((B, S, E), x.dtype),
        grid_spec=pltpu.PrefetchScalarGridSpec(
            num_scalar_prefetch=0,
            grid=(B, n_qt, S // tk),
            in_specs=[
                pl.BlockSpec((None, H, tq, D), lambda b, qi, ki: (b, 0, qi, 0)),
                pl.BlockSpec((None, H, D, tk), lambda b, qi, ki: (b, 0, 0, ki)),
                pl.BlockSpec((None, H, tk, D), lambda b, qi, ki: (b, 0, ki, 0)),
                pl.BlockSpec((E, E), lambda b, qi, ki: (0, 0)),   # Wout resident
                pl.BlockSpec((1, E), lambda b, qi, ki: (0, 0)),   # b_out resident
            ],
            out_specs=pl.BlockSpec((None, tq, E), lambda b, qi, ki: (b, qi, 0)),
            scratch_shapes=[
                pltpu.VMEM((H, tq, 1), jnp.float32),   # running max per head
                pltpu.VMEM((H, tq, 1), jnp.float32),   # running denom per head
                pltpu.VMEM((H, tq, D), jnp.float32),   # per-head context acc
            ],
        ),
        compiler_params=pltpu.CompilerParams(
            dimension_semantics=("parallel", "parallel", "arbitrary"),
            vmem_limit_bytes=vmem_cap),
        cost_estimate=pl.CostEstimate(flops=flops2, transcendentals=trans2,
                                      bytes_accessed=bytes2),
    )(q, kt, v, wout_bf, bout)
    return out


# ---------------------------------------------------------------------------
# Pure-JAX reference mirroring the PyTorch forward (fp32)
# ---------------------------------------------------------------------------
def mha_reference(x, wqkv_t, bqkv, wout_t, bout, num_heads):
    B, S, E = x.shape
    D = E // num_heads
    qkv = x @ wqkv_t + bqkv[0]                                  # (B, S, 3E)
    qkv = qkv.reshape(B, S, 3, num_heads, D)
    q, k, v = qkv[:, :, 0], qkv[:, :, 1], qkv[:, :, 2]
    scale = 1.0 / math.sqrt(D)
    scores = jnp.einsum('bthd,bshd->bhts', q, k * scale)
    attn = jax.nn.softmax(scores, axis=-1)
    ctx = jnp.einsum('bhts,bshd->bthd', attn, v).reshape(B, S, E)
    return ctx @ wout_t + bout[0]


if __name__ == "__main__":
    B, S, E, H = 2, 8, 32, 4          # batch, seqlen, embed_dim, num_heads (D=8)

    key = jax.random.PRNGKey(0)
    kx, k1, k2, k3, k4 = jax.random.split(key, 5)

    x = jax.random.normal(kx, (B, S, E), dtype=jnp.float32)

    # Deterministic synthetic parameters (nn.Linear-style uniform init).
    bound = 1.0 / math.sqrt(E)
    wqkv_t = jax.random.uniform(k1, (E, 3 * E), jnp.float32, -bound, bound)
    bqkv = jax.random.uniform(k2, (1, 3 * E), jnp.float32, -bound, bound)
    wout_t = jax.random.uniform(k3, (E, E), jnp.float32, -bound, bound)
    bout = jax.random.uniform(k4, (1, E), jnp.float32, -bound, bound)

    out = mha_forward(x, wqkv_t, bqkv, wout_t, bout, num_heads=H)
    out = jax.block_until_ready(out)

    ref = mha_reference(x, wqkv_t, bqkv, wout_t, bout, num_heads=H)
    assert out.shape == (B, S, E)
    # bf16 MXU operands (+ approx reciprocal) vs the fp32 reference: allow ~1%.
    assert jnp.allclose(out, ref, atol=5e-2, rtol=5e-2), "mismatch vs reference"

    print("KERNEL_OK")
</pallas_src>

<mosaic_0001>
module attributes {stable_mosaic.version = 11 : i64} {
  func.func @qkv_proj_kernel(%arg0: i32, %arg1: i32, %arg2: memref<1x8x32xf32, #tpu.memory_space<vmem>>, %arg3: memref<32x96xbf16, #tpu.memory_space<vmem>>, %arg4: memref<1x96xf32, #tpu.memory_space<vmem>>, %arg5: memref<1x4x8x8xbf16, #tpu.memory_space<vmem>>, %arg6: memref<1x4x8x8xbf16, #tpu.memory_space<vmem>>, %arg7: memref<1x4x8x8xbf16, #tpu.memory_space<vmem>>) attributes {dimension_semantics = [#tpu.dimension_semantics<parallel>, #tpu.dimension_semantics<parallel>], iteration_bounds = array<i64: 2, 1>, scalar_prefetch = 0 : i64, scratch_operands = 0 : i64, tpu.core_type = #tpu.core_type<tc>, window_params = [{transform_indices = @transform_0, window_bounds = array<i64: 1, 8, 32>}, {pipeline_mode = #tpu.pipeline_mode<synchronous>, transform_indices = @transform_1, window_bounds = array<i64: 32, 96>}, {pipeline_mode = #tpu.pipeline_mode<synchronous>, transform_indices = @transform_2, window_bounds = array<i64: 1, 96>}, {transform_indices = @transform_3, window_bounds = array<i64: 1, 4, 8, 8>}, {transform_indices = @transform_4, window_bounds = array<i64: 1, 4, 8, 8>}, {transform_indices = @transform_5, window_bounds = array<i64: 1, 4, 8, 8>}]} {
    %c0 = arith.constant 0 : index
    %c0_0 = arith.constant 0 : index
    %c0_1 = arith.constant 0 : index
    %0 = vector.load %arg2[%c0, %c0_0, %c0_1] : memref<1x8x32xf32, #tpu.memory_space<vmem>>, vector<1x8x32xf32>
    %1 = vector.shape_cast %0 : vector<1x8x32xf32> to vector<8x32xf32>
    %2 = arith.truncf %1 : vector<8x32xf32> to vector<8x32xbf16>
    %c0_2 = arith.constant 0 : index
    %c0_3 = arith.constant 0 : index
    %3 = vector.load %arg3[%c0_2, %c0_3] : memref<32x96xbf16, #tpu.memory_space<vmem>>, vector<32x96xbf16>
    %cst = arith.constant dense<0.000000e+00> : vector<8x96xf32>
    %4 = tpu.matmul %2, %3, %cst {dimension_numbers = #tpu.dot_dimension_numbers<[1], [0], [0], [1], [0, 0, 1, 1], [], []>} : vector<8x32xbf16>, vector<32x96xbf16>, vector<8x96xf32> -> vector<8x96xf32>
    %c0_4 = arith.constant 0 : index
    %c0_5 = arith.constant 0 : index
    %5 = vector.load %arg4[%c0_4, %c0_5] : memref<1x96xf32, #tpu.memory_space<vmem>>, vector<1x96xf32>
    %6 = vector.broadcast %5 : vector<1x96xf32> to vector<8x96xf32>
    %7 = arith.addf %4, %6 : vector<8x96xf32>
    %8 = vector.extract_strided_slice %7 {offsets = [0, 0], sizes = [8, 8], strides = [1, 1]} : vector<8x96xf32> to vector<8x8xf32>
    %cst_6 = arith.constant 0.353553385 : f32
    %9 = vector.broadcast %cst_6 : f32 to vector<8x8xf32>
    %10 = arith.mulf %8, %9 : vector<8x8xf32>
    %11 = arith.truncf %10 : vector<8x8xf32> to vector<8x8xbf16>
    %c0_7 = arith.constant 0 : index
    %c0_8 = arith.constant 0 : index
    %c0_9 = arith.constant 0 : index
    %c0_10 = arith.constant 0 : index
    %12 = vector.load %arg5[%c0_7, %c0_8, %c0_9, %c0_10] : memref<1x4x8x8xbf16, #tpu.memory_space<vmem>>, vector<1x1x8x8xbf16>
    %13 = vector.shape_cast %12 : vector<1x1x8x8xbf16> to vector<8x8xbf16>
    %14 = vector.shape_cast %11 : vector<8x8xbf16> to vector<1x1x8x8xbf16>
    tpu.vector_store %arg5[%c0_7, %c0_8, %c0_9, %c0_10], %14 {strides = array<i32>} : memref<1x4x8x8xbf16, #tpu.memory_space<vmem>>, vector<1x1x8x8xbf16>,
    %15 = vector.extract_strided_slice %7 {offsets = [0, 32], sizes = [8, 8], strides = [1, 1]} : vector<8x96xf32> to vector<8x8xf32>
    %16 = tpu.transpose %15, [1, 0] : vector<8x8xf32> -> vector<8x8xf32>
    %17 = arith.truncf %16 : vector<8x8xf32> to vector<8x8xbf16>
    %c0_11 = arith.constant 0 : index
    %c0_12 = arith.constant 0 : index
    %c0_13 = arith.constant 0 : index
    %c0_14 = arith.constant 0 : index
    %18 = vector.load %arg6[%c0_11, %c0_12, %c0_13, %c0_14] : memref<1x4x8x8xbf16, #tpu.memory_space<vmem>>, vector<1x1x8x8xbf16>
    %19 = vector.shape_cast %18 : vector<1x1x8x8xbf16> to vector<8x8xbf16>
    %20 = vector.shape_cast %17 : vector<8x8xbf16> to vector<1x1x8x8xbf16>
    tpu.vector_store %arg6[%c0_11, %c0_12, %c0_13, %c0_14], %20 {strides = array<i32>} : memref<1x4x8x8xbf16, #tpu.memory_space<vmem>>, vector<1x1x8x8xbf16>,
    %21 = vector.extract_strided_slice %7 {offsets = [0, 64], sizes = [8, 8], strides = [1, 1]} : vector<8x96xf32> to vector<8x8xf32>
    %22 = arith.truncf %21 : vector<8x8xf32> to vector<8x8xbf16>
    %c0_15 = arith.constant 0 : index
    %c0_16 = arith.constant 0 : index
    %c0_17 = arith.constant 0 : index
    %c0_18 = arith.constant 0 : index
    %23 = vector.load %arg7[%c0_15, %c0_16, %c0_17, %c0_18] : memref<1x4x8x8xbf16, #tpu.memory_space<vmem>>, vector<1x1x8x8xbf16>
    %24 = vector.shape_cast %23 : vector<1x1x8x8xbf16> to vector<8x8xbf16>
    %25 = vector.shape_cast %22 : vector<8x8xbf16> to vector<1x1x8x8xbf16>
    tpu.vector_store %arg7[%c0_15, %c0_16, %c0_17, %c0_18], %25 {strides = array<i32>} : memref<1x4x8x8xbf16, #tpu.memory_space<vmem>>, vector<1x1x8x8xbf16>,
    %26 = vector.extract_strided_slice %7 {offsets = [0, 8], sizes = [8, 8], strides = [1, 1]} : vector<8x96xf32> to vector<8x8xf32>
    %cst_19 = arith.constant 0.353553385 : f32
    %27 = vector.broadcast %cst_19 : f32 to vector<8x8xf32>
    %28 = arith.mulf %26, %27 : vector<8x8xf32>
    %29 = arith.truncf %28 : vector<8x8xf32> to vector<8x8xbf16>
    %c0_20 = arith.constant 0 : index
    %c1 = arith.constant 1 : index
    %c0_21 = arith.constant 0 : index
    %c0_22 = arith.constant 0 : index
    %30 = vector.load %arg5[%c0_20, %c1, %c0_21, %c0_22] : memref<1x4x8x8xbf16, #tpu.memory_space<vmem>>, vector<1x1x8x8xbf16>
    %31 = vector.shape_cast %30 : vector<1x1x8x8xbf16> to vector<8x8xbf16>
    %32 = vector.shape_cast %29 : vector<8x8xbf16> to vector<1x1x8x8xbf16>
    tpu.vector_store %arg5[%c0_20, %c1, %c0_21, %c0_22], %32 {strides = array<i32>} : memref<1x4x8x8xbf16, #tpu.memory_space<vmem>>, vector<1x1x8x8xbf16>,
    %33 = vector.extract_strided_slice %7 {offsets = [0, 40], sizes = [8, 8], strides = [1, 1]} : vector<8x96xf32> to vector<8x8xf32>
    %34 = tpu.transpose %33, [1, 0] : vector<8x8xf32> -> vector<8x8xf32>
    %35 = arith.truncf %34 : vector<8x8xf32> to vector<8x8xbf16>
    %c0_23 = arith.constant 0 : index
    %c1_24 = arith.constant 1 : index
    %c0_25 = arith.constant 0 : index
    %c0_26 = arith.constant 0 : index
    %36 = vector.load %arg6[%c0_23, %c1_24, %c0_25, %c0_26] : memref<1x4x8x8xbf16, #tpu.memory_space<vmem>>, vector<1x1x8x8xbf16>
    %37 = vector.shape_cast %36 : vector<1x1x8x8xbf16> to vector<8x8xbf16>
    %38 = vector.shape_cast %35 : vector<8x8xbf16> to vector<1x1x8x8xbf16>
    tpu.vector_store %arg6[%c0_23, %c1_24, %c0_25, %c0_26], %38 {strides = array<i32>} : memref<1x4x8x8xbf16, #tpu.memory_space<vmem>>, vector<1x1x8x8xbf16>,
    %39 = vector.extract_strided_slice %7 {offsets = [0, 72], sizes = [8, 8], strides = [1, 1]} : vector<8x96xf32> to vector<8x8xf32>
    %40 = arith.truncf %39 : vector<8x8xf32> to vector<8x8xbf16>
    %c0_27 = arith.constant 0 : index
    %c1_28 = arith.constant 1 : index
    %c0_29 = arith.constant 0 : index
    %c0_30 = arith.constant 0 : index
    %41 = vector.load %arg7[%c0_27, %c1_28, %c0_29, %c0_30] : memref<1x4x8x8xbf16, #tpu.memory_space<vmem>>, vector<1x1x8x8xbf16>
    %42 = vector.shape_cast %41 : vector<1x1x8x8xbf16> to vector<8x8xbf16>
    %43 = vector.shape_cast %40 : vector<8x8xbf16> to vector<1x1x8x8xbf16>
    tpu.vector_store %arg7[%c0_27, %c1_28, %c0_29, %c0_30], %43 {strides = array<i32>} : memref<1x4x8x8xbf16, #tpu.memory_space<vmem>>, vector<1x1x8x8xbf16>,
    %44 = vector.extract_strided_slice %7 {offsets = [0, 16], sizes = [8, 8], strides = [1, 1]} : vector<8x96xf32> to vector<8x8xf32>
    %cst_31 = arith.constant 0.353553385 : f32
    %45 = vector.broadcast %cst_31 : f32 to vector<8x8xf32>
    %46 = arith.mulf %44, %45 : vector<8x8xf32>
    %47 = arith.truncf %46 : vector<8x8xf32> to vector<8x8xbf16>
    %c0_32 = arith.constant 0 : index
    %c2 = arith.constant 2 : index
    %c0_33 = arith.constant 0 : index
    %c0_34 = arith.constant 0 : index
    %48 = vector.load %arg5[%c0_32, %c2, %c0_33, %c0_34] : memref<1x4x8x8xbf16, #tpu.memory_space<vmem>>, vector<1x1x8x8xbf16>
    %49 = vector.shape_cast %48 : vector<1x1x8x8xbf16> to vector<8x8xbf16>
    %50 = vector.shape_cast %47 : vector<8x8xbf16> to vector<1x1x8x8xbf16>
    tpu.vector_store %arg5[%c0_32, %c2, %c0_33, %c0_34], %50 {strides = array<i32>} : memref<1x4x8x8xbf16, #tpu.memory_space<vmem>>, vector<1x1x8x8xbf16>,
    %51 = vector.extract_strided_slice %7 {offsets = [0, 48], sizes = [8, 8], strides = [1, 1]} : vector<8x96xf32> to vector<8x8xf32>
    %52 = tpu.transpose %51, [1, 0] : vector<8x8xf32> -> vector<8x8xf32>
    %53 = arith.truncf %52 : vector<8x8xf32> to vector<8x8xbf16>
    %c0_35 = arith.constant 0 : index
    %c2_36 = arith.constant 2 : index
    %c0_37 = arith.constant 0 : index
    %c0_38 = arith.constant 0 : index
    %54 = vector.load %arg6[%c0_35, %c2_36, %c0_37, %c0_38] : memref<1x4x8x8xbf16, #tpu.memory_space<vmem>>, vector<1x1x8x8xbf16>
    %55 = vector.shape_cast %54 : vector<1x1x8x8xbf16> to vector<8x8xbf16>
    %56 = vector.shape_cast %53 : vector<8x8xbf16> to vector<1x1x8x8xbf16>
    tpu.vector_store %arg6[%c0_35, %c2_36, %c0_37, %c0_38], %56 {strides = array<i32>} : memref<1x4x8x8xbf16, #tpu.memory_space<vmem>>, vector<1x1x8x8xbf16>,
    %57 = vector.extract_strided_slice %7 {offsets = [0, 80], sizes = [8, 8], strides = [1, 1]} : vector<8x96xf32> to vector<8x8xf32>
    %58 = arith.truncf %57 : vector<8x8xf32> to vector<8x8xbf16>
    %c0_39 = arith.constant 0 : index
    %c2_40 = arith.constant 2 : index
    %c0_41 = arith.constant 0 : index
    %c0_42 = arith.constant 0 : index
    %59 = vector.load %arg7[%c0_39, %c2_40, %c0_41, %c0_42] : memref<1x4x8x8xbf16, #tpu.memory_space<vmem>>, vector<1x1x8x8xbf16>
    %60 = vector.shape_cast %59 : vector<1x1x8x8xbf16> to vector<8x8xbf16>
    %61 = vector.shape_cast %58 : vector<8x8xbf16> to vector<1x1x8x8xbf16>
    tpu.vector_store %arg7[%c0_39, %c2_40, %c0_41, %c0_42], %61 {strides = array<i32>} : memref<1x4x8x8xbf16, #tpu.memory_space<vmem>>, vector<1x1x8x8xbf16>,
    %62 = vector.extract_strided_slice %7 {offsets = [0, 24], sizes = [8, 8], strides = [1, 1]} : vector<8x96xf32> to vector<8x8xf32>
    %cst_43 = arith.constant 0.353553385 : f32
    %63 = vector.broadcast %cst_43 : f32 to vector<8x8xf32>
    %64 = arith.mulf %62, %63 : vector<8x8xf32>
    %65 = arith.truncf %64 : vector<8x8xf32> to vector<8x8xbf16>
    %c0_44 = arith.constant 0 : index
    %c3 = arith.constant 3 : index
    %c0_45 = arith.constant 0 : index
    %c0_46 = arith.constant 0 : index
    %66 = vector.load %arg5[%c0_44, %c3, %c0_45, %c0_46] : memref<1x4x8x8xbf16, #tpu.memory_space<vmem>>, vector<1x1x8x8xbf16>
    %67 = vector.shape_cast %66 : vector<1x1x8x8xbf16> to vector<8x8xbf16>
    %68 = vector.shape_cast %65 : vector<8x8xbf16> to vector<1x1x8x8xbf16>
    tpu.vector_store %arg5[%c0_44, %c3, %c0_45, %c0_46], %68 {strides = array<i32>} : memref<1x4x8x8xbf16, #tpu.memory_space<vmem>>, vector<1x1x8x8xbf16>,
    %69 = vector.extract_strided_slice %7 {offsets = [0, 56], sizes = [8, 8], strides = [1, 1]} : vector<8x96xf32> to vector<8x8xf32>
    %70 = tpu.transpose %69, [1, 0] : vector<8x8xf32> -> vector<8x8xf32>
    %71 = arith.truncf %70 : vector<8x8xf32> to vector<8x8xbf16>
    %c0_47 = arith.constant 0 : index
    %c3_48 = arith.constant 3 : index
    %c0_49 = arith.constant 0 : index
    %c0_50 = arith.constant 0 : index
    %72 = vector.load %arg6[%c0_47, %c3_48, %c0_49, %c0_50] : memref<1x4x8x8xbf16, #tpu.memory_space<vmem>>, vector<1x1x8x8xbf16>
    %73 = vector.shape_cast %72 : vector<1x1x8x8xbf16> to vector<8x8xbf16>
    %74 = vector.shape_cast %71 : vector<8x8xbf16> to vector<1x1x8x8xbf16>
    tpu.vector_store %arg6[%c0_47, %c3_48, %c0_49, %c0_50], %74 {strides = array<i32>} : memref<1x4x8x8xbf16, #tpu.memory_space<vmem>>, vector<1x1x8x8xbf16>,
    %75 = vector.extract_strided_slice %7 {offsets = [0, 88], sizes = [8, 8], strides = [1, 1]} : vector<8x96xf32> to vector<8x8xf32>
    %76 = arith.truncf %75 : vector<8x8xf32> to vector<8x8xbf16>
    %c0_51 = arith.constant 0 : index
    %c3_52 = arith.constant 3 : index
    %c0_53 = arith.constant 0 : index
    %c0_54 = arith.constant 0 : index
    %77 = vector.load %arg7[%c0_51, %c3_52, %c0_53, %c0_54] : memref<1x4x8x8xbf16, #tpu.memory_space<vmem>>, vector<1x1x8x8xbf16>
    %78 = vector.shape_cast %77 : vector<1x1x8x8xbf16> to vector<8x8xbf16>
    %79 = vector.shape_cast %76 : vector<8x8xbf16> to vector<1x1x8x8xbf16>
    tpu.vector_store %arg7[%c0_51, %c3_52, %c0_53, %c0_54], %79 {strides = array<i32>} : memref<1x4x8x8xbf16, #tpu.memory_space<vmem>>, vector<1x1x8x8xbf16>,
    return
  }
  func.func @transform_0(%arg0: i32, %arg1: i32) -> (i32, i32, i32) {
    %c0_i32 = arith.constant 0 : i32
    %c0_i32_0 = arith.constant 0 : i32
    return %arg0, %arg1, %c0_i32 : i32, i32, i32
  }
  func.func @transform_1(%arg0: i32, %arg1: i32) -> (i32, i32) {
    %c0_i32 = arith.constant 0 : i32
    %c0_i32_0 = arith.constant 0 : i32
    %c0_i32_1 = arith.constant 0 : i32
    return %c0_i32, %c0_i32_0 : i32, i32
  }
  func.func @transform_2(%arg0: i32, %arg1: i32) -> (i32, i32) {
    %c0_i32 = arith.constant 0 : i32
    %c0_i32_0 = arith.constant 0 : i32
    %c0_i32_1 = arith.constant 0 : i32
    return %c0_i32, %c0_i32_0 : i32, i32
  }
  func.func @transform_3(%arg0: i32, %arg1: i32) -> (i32, i32, i32, i32) {
    %c0_i32 = arith.constant 0 : i32
    %c0_i32_0 = arith.constant 0 : i32
    %c0_i32_1 = arith.constant 0 : i32
    return %arg0, %c0_i32, %arg1, %c0_i32_0 : i32, i32, i32, i32
  }
  func.func @transform_4(%arg0: i32, %arg1: i32) -> (i32, i32, i32, i32) {
    %c0_i32 = arith.constant 0 : i32
    %c0_i32_0 = arith.constant 0 : i32
    %c0_i32_1 = arith.constant 0 : i32
    return %arg0, %c0_i32, %c0_i32_0, %arg1 : i32, i32, i32, i32
  }
  func.func @transform_5(%arg0: i32, %arg1: i32) -> (i32, i32, i32, i32) {
    %c0_i32 = arith.constant 0 : i32
    %c0_i32_0 = arith.constant 0 : i32
    %c0_i32_1 = arith.constant 0 : i32
    return %arg0, %c0_i32, %arg1, %c0_i32_0 : i32, i32, i32, i32
  }
}

</mosaic_0001>

<llo_original>
// kernel: tpu_custom_call.1
$region0: #{tpu_custom_call.1}
  #allocation0 [shape = 'u32[]', space=smem, size = 0x4, offset = 0x4, fixed_abs, tag = 'smem constant byte address 0x4 - core index']
  #allocation1 [shape = 'u32[72,128]{1,0:T(1,128)}', space=vmem, size = 0x9000, scoped, tag = 'internal scratch']
  %s0 = inlined_call_operand.hbm [shape: f32[2,8,32], index: 0, kind: input, shape index: {}]
  %s1 = inlined_call_operand.hbm [shape: bf16[32,96], index: 1, kind: input, shape index: {}]
  %s2 = inlined_call_operand.vmem [shape: f32[1,96], index: 2, kind: input, shape index: {}]
  %s3 = inlined_call_operand.hbm [shape: bf16[2,4,8,8], index: 3, kind: output, shape index: {0}]
  %s4 = inlined_call_operand.hbm [shape: bf16[2,4,8,8], index: 4, kind: output, shape index: {1}]
  %s5 = inlined_call_operand.hbm [shape: bf16[2,4,8,8], index: 5, kind: output, shape index: {2}]
  %6 = xla_tuple %s3, %s4, %s5
  %s7 = sld [smem:[#allocation0]]
  $region69: #{tpu_custom_call.1} parent=0
    _
  %s9 = ssub.s32 1, %s7
  %s10 = scalar_select 0, %s9, %s7
  $region1: #{tpu_custom_call.1} parent=0
    #allocation2 [shape = 'u8[8192]{0}', space=vmem, size = 0x2000, scoped, tag = 'input window, operand 0']
    #allocation3 [shape = 's32[2]{0}', space=sflag, size = 0x8, scoped, tag = 'scoped memory for tpu_custom_call.1']
    #allocation4 [shape = 's32[2]{0}', space=sflag, size = 0x8, scoped, tag = 'scoped memory for tpu_custom_call.1']
    #allocation5 [shape = 'u8[8192]{0}', space=vmem, size = 0x2000, scoped, tag = 'input window, operand 1, single buffered']
    #allocation6 [shape = 's32[1]{0}', space=sflag, size = 0x4, scoped, tag = 'scoped memory for tpu_custom_call.1']
    #allocation7 [shape = 'u8[16384]{0}', space=vmem, size = 0x4000, scoped, tag = 'output window, operand 0']
    #allocation8 [shape = 'u8[16384]{0}', space=vmem, size = 0x4000, scoped, tag = 'output window, operand 1']
    #allocation9 [shape = 's32[2]{0}', space=sflag, size = 0x8, scoped, tag = 'scoped memory for tpu_custom_call.1']
    #allocation10 [shape = 'u8[16384]{0}', space=vmem, size = 0x4000, scoped, tag = 'output window, operand 2']
    %11 = vsyncpa [#allocation3], 0
    %s12 = scalar_lea.sflag [#allocation3], 1
    %13 = vsyncpa %s12, 0
    %14 = vsyncpa [#allocation6], 0
    %15 = vsyncpa [#allocation4], 0
    %s16 = scalar_lea.sflag [#allocation4], 1
    %17 = vsyncpa %s16, 0
    %18 = vsyncpa [#allocation9], 0
    %s19 = scalar_lea.sflag [#allocation9], 1
    %20 = vsyncpa %s19, 0
    loop: start=0, step=1, limit=4
    $region2: #{tpu_custom_call.1} parent=1 // loop_pre_header
      _
    $region3: #{tpu_custom_call.1} parent=1 // loop_header
      %s22 = sphi 0, %s26
      %p23 = scmp.ge.s32.totalorder %s22, 4
      %s29 = sphi 0, %s41
      %s30 = sphi 0, %s37
      %s31 = sphi 0, %s29
      %s32 = sphi 0, %s30
      %s33 = sphi 0, %s31
      %s34 = sphi 0, %s32
      %s46 = sphi 0, %s48
      %s49 = sphi 0, %s46
      %s50 = sphi 0, %s49
      %s66 = sphi 0, %s50
      %s70 = sphi 0, %s70
      %s72 = sphi 0, %s70
      %s73 = sphi 0, %s72
      %s87 = sphi 0, %s73
      %s91 = sphi 0, %s91
      %s93 = sphi 0, %s91
      %s94 = sphi 0, %s93
      %s108 = sphi 0, %s94
      %s116 = sphi 0, %s118
      %s119 = sphi 0, %s116
      %s120 = sphi 0, %s119
      %s136 = sphi 0, %s120
      %s144 = sphi 0, %s146
      %s147 = sphi 0, %s144
      %s148 = sphi 0, %s147
      %s164 = sphi 0, %s148
      %s172 = sphi 0, %s174
      %s175 = sphi 0, %s172
      %s176 = sphi 0, %s175
      %s192 = sphi 0, %s176
    $region4: #{tpu_custom_call.1} parent=1 // loop_header_branch
      %25 = sbr.rel (%p23) target = $region8
    $region5: #{tpu_custom_call.1} parent=1 // loop_body
      %s27 = ssub.s32 %s22, 1
      %s28 = ssub.s32 %s22, 2
      %s35 = sadd.s32 1, %s30
      %p36 = scmp.ge.s32.totalorder %s35, 1
      %s37 = scalar_select %p36, 0, %s35
      %s38 = sadd.s32 1, %s29
      %s39 = scalar_select %p36, %s38, %s29
      %p40 = scmp.ge.s32.totalorder %s39, 2
      %s41 = scalar_select %p40, 0, %s39
      %s42 = ssub.s32 %s29, %s41
      %s43 = ssub.s32 %s30, %s37
      %s44 = sor.u32 %s42, %s43
      %p45 = scmp.eq.s32.totalorder %s44, 0
      %s47 = sadd.s32 %s46, 1
      %s48 = scalar_select %p45, %s46, %s47
      %p51 = pneg %p45
      %p52 = scmp.eq.s32.totalorder %s22, 1
      %p53 = por %p51, %p52
      %p54 = scmp.ne.s32.totalorder %s46, %s49
      %p55 = scmp.eq.s32.totalorder %s22, 0
      %p56 = por %p54, %p55
      %p57 = scmp.ne.s32.totalorder %s46, %s49
      %p58 = scmp.eq.s32.totalorder %s27, 1
      %p59 = por %p57, %p58
      %p60 = scmp.ne.s32.totalorder %s49, %s50
      %p61 = scmp.eq.s32.totalorder %s27, 0
      %p62 = por %p60, %p61
      %p63 = scmp.ne.s32.totalorder %s49, %s50
      %p64 = scmp.eq.s32.totalorder %s28, 1
      %p65 = por %p63, %p64
      %p67 = scmp.ne.s32.totalorder %s50, %s66
      %p68 = scmp.eq.s32.totalorder %s28, 0
      %p69 = por %p67, %p68
      %s71 = sadd.s32 %s70, 1
      %p74 = scmp.eq.s32.totalorder %s22, 1
      %p75 = scmp.ne.s32.totalorder %s70, %s72
      %p76 = scmp.eq.s32.totalorder %s22, 0
      %p77 = por %p75, %p76
      %p78 = scmp.ne.s32.totalorder %s70, %s72
      %p79 = scmp.eq.s32.totalorder %s27, 1
      %p80 = por %p78, %p79
      %p81 = scmp.ne.s32.totalorder %s72, %s73
      %p82 = scmp.eq.s32.totalorder %s27, 0
      %p83 = por %p81, %p82
      %p84 = scmp.ne.s32.totalorder %s72, %s73
      %p85 = scmp.eq.s32.totalorder %s28, 1
      %p86 = por %p84, %p85
      %p88 = scmp.ne.s32.totalorder %s73, %s87
      %p89 = scmp.eq.s32.totalorder %s28, 0
      %p90 = por %p88, %p89
      %s92 = sadd.s32 %s91, 1
      %p95 = scmp.eq.s32.totalorder %s22, 1
      %p96 = scmp.ne.s32.totalorder %s91, %s93
      %p97 = scmp.eq.s32.totalorder %s22, 0
      %p98 = por %p96, %p97
      %p99 = scmp.ne.s32.totalorder %s91, %s93
      %p100 = scmp.eq.s32.totalorder %s27, 1
      %p101 = por %p99, %p100
      %p102 = scmp.ne.s32.totalorder %s93, %s94
      %p103 = scmp.eq.s32.totalorder %s27, 0
      %p104 = por %p102, %p103
      %p105 = scmp.ne.s32.totalorder %s93, %s94
      %p106 = scmp.eq.s32.totalorder %s28, 1
      %p107 = por %p105, %p106
      %p109 = scmp.ne.s32.totalorder %s94, %s108
      %p110 = scmp.eq.s32.totalorder %s28, 0
      %p111 = por %p109, %p110
      %s112 = ssub.s32 %s29, %s41
      %s113 = ssub.s32 %s30, %s37
      %s114 = sor.u32 %s112, %s113
      %p115 = scmp.eq.s32.totalorder %s114, 0
      %s117 = sadd.s32 %s116, 1
      %s118 = scalar_select %p115, %s116, %s117
      %p121 = pneg %p115
      %p122 = scmp.eq.s32.totalorder %s22, 1
      %p123 = por %p121, %p122
      %p124 = scmp.ne.s32.totalorder %s116, %s119
      %p125 = scmp.eq.s32.totalorder %s22, 0
      %p126 = por %p124, %p125
      %p127 = scmp.ne.s32.totalorder %s116, %s119
      %p128 = scmp.eq.s32.totalorder %s27, 1
      %p129 = por %p127, %p128
      %p130 = scmp.ne.s32.totalorder %s119, %s120
      %p131 = scmp.eq.s32.totalorder %s27, 0
      %p132 = por %p130, %p131
      %p133 = scmp.ne.s32.totalorder %s119, %s120
      %p134 = scmp.eq.s32.totalorder %s28, 1
      %p135 = por %p133, %p134
      %p137 = scmp.ne.s32.totalorder %s120, %s136
      %p138 = scmp.eq.s32.totalorder %s28, 0
      %p139 = por %p137, %p138
      %s140 = ssub.s32 %s29, %s41
      %s141 = ssub.s32 %s30, %s37
      %s142 = sor.u32 %s140, %s141
      %p143 = scmp.eq.s32.totalorder %s142, 0
      %s145 = sadd.s32 %s144, 1
      %s146 = scalar_select %p143, %s144, %s145
      %p149 = pneg %p143
      %p150 = scmp.eq.s32.totalorder %s22, 1
      %p151 = por %p149, %p150
      %p152 = scmp.ne.s32.totalorder %s144, %s147
      %p153 = scmp.eq.s32.totalorder %s22, 0
      %p154 = por %p152, %p153
      %p155 = scmp.ne.s32.totalorder %s144, %s147
      %p156 = scmp.eq.s32.totalorder %s27, 1
      %p157 = por %p155, %p156
      %p158 = scmp.ne.s32.totalorder %s147, %s148
      %p159 = scmp.eq.s32.totalorder %s27, 0
      %p160 = por %p158, %p159
      %p161 = scmp.ne.s32.totalorder %s147, %s148
      %p162 = scmp.eq.s32.totalorder %s28, 1
      %p163 = por %p161, %p162
      %p165 = scmp.ne.s32.totalorder %s148, %s164
      %p166 = scmp.eq.s32.totalorder %s28, 0
      %p167 = por %p165, %p166
      %s168 = ssub.s32 %s29, %s41
      %s169 = ssub.s32 %s30, %s37
      %s170 = sor.u32 %s168, %s169
      %p171 = scmp.eq.s32.totalorder %s170, 0
      %s173 = sadd.s32 %s172, 1
      %s174 = scalar_select %p171, %s172, %s173
      %p177 = pneg %p171
      %p178 = scmp.eq.s32.totalorder %s22, 1
      %p179 = por %p177, %p178
      %p180 = scmp.ne.s32.totalorder %s172, %s175
      %p181 = scmp.eq.s32.totalorder %s22, 0
      %p182 = por %p180, %p181
      %p183 = scmp.ne.s32.totalorder %s172, %s175
      %p184 = scmp.eq.s32.totalorder %s27, 1
      %p185 = por %p183, %p184
      %p186 = scmp.ne.s32.totalorder %s175, %s176
      %p187 = scmp.eq.s32.totalorder %s27, 0
      %p188 = por %p186, %p187
      %p189 = scmp.ne.s32.totalorder %s175, %s176
      %p190 = scmp.eq.s32.totalorder %s28, 1
      %p191 = por %p189, %p190
      %p193 = scmp.ne.s32.totalorder %s176, %s192
      %p194 = scmp.eq.s32.totalorder %s28, 0
      %p195 = por %p193, %p194
      %p196 = scmp.le.s32.totalorder 1, %s22
      %p197 = scmp.lt.s32.totalorder %s22, 3
      %p198 = pnand %p196, %p197
      %p199 = pneg %p198
      // Predicated region
      $region9: #{tpu_custom_call.1} parent=5 // pred_check
        _
      $region10: #{tpu_custom_call.1} parent=5 // pred_check_branch
        %201 = sbr.rel (%p198) target = $region12
      $region11: #{tpu_custom_call.1} parent=5 // pred_region
        %s202 = ssub.s32 %s22, 1
        // Predicated region
        $region13: #{tpu_custom_call.1} parent=11 // pred_check
          %p203 = pneg %p83
        $region14: #{tpu_custom_call.1} parent=11 // pred_check_branch
          %205 = sbr.rel (%p203) target = $region16
        $region15: #{tpu_custom_call.1} parent=11 // pred_region
          %207 = vsyncadd [#allocation6], 0
          %s208 = sshll.u32 %s1, 4
          %s209 = int_to_ptr.hbm [resolvable:$true] %s208
          %s210 = sshll.u32 [#allocation5], 4
          %s211 = int_to_ptr.vmem [resolvable:$true] %s210
          %216 = dma.hbm_to_vmem [thread:$0]  %s209, 256, %s211, [#allocation6], 64, 64, 4
        $region16: #{tpu_custom_call.1} parent=11 // pred_fallthru
          _
        // Predicated region
        $region17: #{tpu_custom_call.1} parent=11 // pred_check
          %p217 = pneg %p104
        $region18: #{tpu_custom_call.1} parent=11 // pred_check_branch
          %219 = sbr.rel (%p217) target = $region20
        $region19: #{tpu_custom_call.1} parent=11 // pred_region
          _
        $region20: #{tpu_custom_call.1} parent=11 // pred_fallthru
          _
      $region12: #{tpu_custom_call.1} parent=5 // pred_fallthru
        _
      %p220 = scmp.lt.s32.totalorder %s22, 2
      // Predicated region
      $region21: #{tpu_custom_call.1} parent=5 // pred_check
        %p221 = pneg %p220
      $region22: #{tpu_custom_call.1} parent=5 // pred_check_branch
        %223 = sbr.rel (%p221) target = $region24
      $region23: #{tpu_custom_call.1} parent=5 // pred_region
        // Predicated region
        $region25: #{tpu_custom_call.1} parent=23 // pred_check
          %p224 = pneg %p56
        $region26: #{tpu_custom_call.1} parent=23 // pred_check_branch
          %226 = sbr.rel (%p224) target = $region28
        $region27: #{tpu_custom_call.1} parent=23 // pred_region
          %s227 = sand.u32 %s46, 1
          %s228 = scalar_lea.sflag [#allocation3], %s227
          %s229 = sand.u32 %s46, 1
          %s230 = smul.addr %s229, 8
          %s231 = scalar_lea.vmem [#allocation2], %s230
          %233 = vsyncadd %s228, 0
          %s234 = sadd.s32 %s30, %s29
          %s235 = smul.addr %s234, 8
          %s236 = scalar_lea.hbm %s0, %s235
          %s238 = sshll.u32 %s236, 4
          %s239 = int_to_ptr.hbm [resolvable:$true] %s238
          %s240 = sshll.u32 %s231, 4
          %s241 = int_to_ptr.vmem [resolvable:$true] %s240
          %243 = dma.hbm_to_vmem [thread:$0]  %s239, 128, %s241, %s228
        $region28: #{tpu_custom_call.1} parent=23 // pred_fallthru
          _
      $region24: #{tpu_custom_call.1} parent=5 // pred_fallthru
        _
      %p244 = scmp.le.s32.totalorder 1, %s22
      %p245 = scmp.lt.s32.totalorder %s22, 3
      %p246 = pnand %p244, %p245
      %p247 = pneg %p246
      // Predicated region
      $region29: #{tpu_custom_call.1} parent=5 // pred_check
        _
      $region30: #{tpu_custom_call.1} parent=5 // pred_check_branch
        %249 = sbr.rel (%p246) target = $region32
      $region31: #{tpu_custom_call.1} parent=5 // pred_region
        %s250 = ssub.s32 %s22, 1
        %s251 = sand.u32 %s49, 1
        %s252 = scalar_lea.sflag [#allocation3], %s251
        %s253 = sand.u32 %s49, 1
        %s254 = smul.addr %s253, 8
        %s255 = scalar_lea.vmem [#allocation2], %s254
        // Predicated region
        $region33: #{tpu_custom_call.1} parent=31 // pred_check
          %p256 = pneg %p62
        $region34: #{tpu_custom_call.1} parent=31 // pred_check_branch
          %258 = sbr.rel (%p256) target = $region36
        $region35: #{tpu_custom_call.1} parent=31 // pred_region
          %260 = dma.done %s252, 128
        $region36: #{tpu_custom_call.1} parent=31 // pred_fallthru
          _
        // Predicated region
        $region37: #{tpu_custom_call.1} parent=31 // pred_check
          %p261 = pneg %p83
        $region38: #{tpu_custom_call.1} parent=31 // pred_check_branch
          %263 = sbr.rel (%p261) target = $region40
        $region39: #{tpu_custom_call.1} parent=31 // pred_region
          %265 = dma.done [#allocation6], 256
        $region40: #{tpu_custom_call.1} parent=31 // pred_fallthru
          _
        %s266 = sand.u32 %s49, 1
        %s267 = scalar_lea.sflag [#allocation3], %s266
        %s268 = sand.u32 %s49, 1
        %s269 = smul.addr %s268, 8
        %s270 = scalar_lea.vmem [#allocation2], %s269
        %p271 = pneg %p62
        %p272 = pneg %p59
        %p273 = pneg %p83
        %p274 = pneg %p80
        %p275 = pneg %p104
        %p276 = pneg %p101
        %p277 = pneg %p132
        %p278 = pneg %p129
        %s279 = sand.u32 %s119, 1
        %s280 = scalar_lea.sflag [#allocation4], %s279
        %s281 = sand.u32 %s119, 1
        %s282 = smul.addr %s281, 16
        %s283 = scalar_lea.vmem [#allocation7], %s282
        %p284 = pneg %p160
        %p285 = pneg %p157
        %s286 = sand.u32 %s27, 1
        %s287 = scalar_lea.sflag [#allocation9], %s286
        %s288 = sand.u32 %s147, 1
        %s289 = smul.addr %s288, 16
        %s290 = scalar_lea.vmem [#allocation8], %s289
        %p291 = pneg %p188
        %p292 = pneg %p185
        %s293 = sand.u32 %s27, 1
        %s294 = scalar_lea.sflag [#allocation9], %s293
        %s295 = sand.u32 %s175, 1
        %s296 = smul.addr %s295, 16
        %s297 = scalar_lea.vmem [#allocation10], %s296
        %v299 = vld [vmem:[%s255] sm:$0xff]
        %v300 = vpack.c.bf16 %v299, %v299
        %v301 = vld [vmem:[#allocation5] sm:$0xf]
        %v302 = vld [vmem:[#allocation5 + $0x4] sm:$0xf]
        %v303 = vld [vmem:[#allocation5 + $0x8] sm:$0xf]
        %v304 = vld [vmem:[#allocation5 + $0xc] sm:$0xf]
        %v305 = vld [vmem:[%s2] sm:$0x1]
        %v307 = vperm.slane %v305, 0
        %v313 = vunpack.c.l.b16 %v301
        %v314 = vunpack.c.l.b16 %v302
        %v315 = vunpack.c.l.b16 %v303
        %v316 = vunpack.c.l.b16 %v304
        %v317 = vpack.c.b16 %v314, %v313
        %v318 = vpack.c.b16 %v316, %v315
        %vm321 = vcmask 261120
        %v323 = vsel %vm321, %v300, 0
        %325 = vmatpush.bf16.msra.mxu0 0
        %326 = vmatpush.bf16.msra.mxu0 0
        %327 = vmatpush.bf16.msra.mxu0 0
        %328 = vmatpush.bf16.msra.mxu0 0
        %329 = vmatpush.bf16.msra.mxu0 0
        %330 = vmatpush.bf16.msra.mxu0 0
        %331 = vmatpush.bf16.msra.mxu0 %v318
        %332 = vmatpush.bf16.msra.mxu0 %v317
        %333 = vmatmul.bf16.gmra.mxu0 %v323
        %v334 = vpop.f32.mrf.mxu0
        %v335 = vadd.f32 %v307, %v334
        %v336 = vpop.f32.mrf.mxu0
        %337 = vdwg.mxu0
        %v338 = vmul.f32 %v335, 0.35355338
        %v339 = vpack.c.bf16 %v338, %v338
        %vm340 = vcmask 60416
        %341 = vst.msk [vmem:[%s283] sm:$0xf] %vm340, %v339
        %343 = vrot.lane.b32.xlu0 %v335, 96
        %v344 = vpop.permute.xlu0 %343
        %346 = vxpose.xlu0.b32.start [1/16] %v344, 128
        %347 = vxpose.xlu0.b32.cont [2/16] 0.0, 128
        %348 = vxpose.xlu0.b32.cont [3/16] 0.0, 128
        %349 = vxpose.xlu0.b32.cont [4/16] 0.0, 128
        %350 = vxpose.xlu0.b32.cont [5/16] 0.0, 128
        %351 = vxpose.xlu0.b32.cont [6/16] 0.0, 128
        %352 = vxpose.xlu0.b32.cont [7/16] 0.0, 128
        %353 = vxpose.xlu0.b32.cont [8/16] 0.0, 128
        %354 = vxpose.xlu0.b32.cont [9/16] 0.0, 128
        %355 = vxpose.xlu0.b32.cont [10/16] 0.0, 128
        %356 = vxpose.xlu0.b32.cont [11/16] 0.0, 128
        %357 = vxpose.xlu0.b32.cont [12/16] 0.0, 128
        %358 = vxpose.xlu0.b32.cont [13/16] 0.0, 128
        %359 = vxpose.xlu0.b32.cont [14/16] 0.0, 128
        %360 = vxpose.xlu0.b32.cont [15/16] 0.0, 128
        %361 = vxpose.xlu0.b32.end [16/16] 0.0, 128
        %v362 = vpop.trf.xlu0
        %v363 = vpop.trf.xlu0
        %v364 = vpop.trf.xlu0
        %v365 = vpop.trf.xlu0
        %v366 = vpop.trf.xlu0
        %v367 = vpop.trf.xlu0
        %v368 = vpop.trf.xlu0
        %v369 = vpop.trf.xlu0
        %v370 = vpop.trf.xlu0
        %v371 = vpop.trf.xlu0
        %v372 = vpop.trf.xlu0
        %v373 = vpop.trf.xlu0
        %v374 = vpop.trf.xlu0
        %v375 = vpop.trf.xlu0
        %v376 = vpop.trf.xlu0
        %v377 = vpop.trf.xlu0
        %v378 = vpack.c.bf16 %v362, %v362
        %379 = vst.msk [vmem:[%s290] sm:$0xf] %vm340, %v378
        %v380 = vpack.c.bf16 %v335, %v335
        %382 = vrot.lane.b32.xlu0 %v380, 64
        %v383 = vpop.permute.xlu0 %382
        %385 = vst.msk [vmem:[%s297] sm:$0xf] %vm340, %v383
        %387 = vrot.lane.b32.xlu0 %v339, 120
        %v388 = vpop.permute.xlu0 %387
        %s390 = scalar_lea.vmem %s283, 4 [#allocation7]
        %391 = vst.msk [vmem:[%s390] sm:$0xf] %vm340, %v388
        %392 = vrot.lane.b32.xlu0 %v335, 88
        %v393 = vpop.permute.xlu0 %392
        %395 = vxpose.xlu0.b32.start [1/16] %v393, 128
        %396 = vxpose.xlu0.b32.cont [2/16] 0.0, 128
        %397 = vxpose.xlu0.b32.cont [3/16] 0.0, 128
        %398 = vxpose.xlu0.b32.cont [4/16] 0.0, 128
        %399 = vxpose.xlu0.b32.cont [5/16] 0.0, 128
        %400 = vxpose.xlu0.b32.cont [6/16] 0.0, 128
        %401 = vxpose.xlu0.b32.cont [7/16] 0.0, 128
        %402 = vxpose.xlu0.b32.cont [8/16] 0.0, 128
        %403 = vxpose.xlu0.b32.cont [9/16] 0.0, 128
        %404 = vxpose.xlu0.b32.cont [10/16] 0.0, 128
        %405 = vxpose.xlu0.b32.cont [11/16] 0.0, 128
        %406 = vxpose.xlu0.b32.cont [12/16] 0.0, 128
        %407 = vxpose.xlu0.b32.cont [13/16] 0.0, 128
        %408 = vxpose.xlu0.b32.cont [14/16] 0.0, 128
        %409 = vxpose.xlu0.b32.cont [15/16] 0.0, 128
        %410 = vxpose.xlu0.b32.end [16/16] 0.0, 128
        %v411 = vpop.trf.xlu0
        %v412 = vpop.trf.xlu0
        %v413 = vpop.trf.xlu0
        %v414 = vpop.trf.xlu0
        %v415 = vpop.trf.xlu0
        %v416 = vpop.trf.xlu0
        %v417 = vpop.trf.xlu0
        %v418 = vpop.trf.xlu0
        %v419 = vpop.trf.xlu0
        %v420 = vpop.trf.xlu0
        %v421 = vpop.trf.xlu0
        %v422 = vpop.trf.xlu0
        %v423 = vpop.trf.xlu0
        %v424 = vpop.trf.xlu0
        %v425 = vpop.trf.xlu0
        %v426 = vpop.trf.xlu0
        %v427 = vpack.c.bf16 %v411, %v411
        %s428 = scalar_lea.vmem %s290, 4 [#allocation8]
        %429 = vst.msk [vmem:[%s428] sm:$0xf] %vm340, %v427
        %430 = vrot.lane.b32.xlu0 %v380, 56
        %v431 = vpop.permute.xlu0 %430
        %s433 = scalar_lea.vmem %s297, 4 [#allocation10]
        %434 = vst.msk [vmem:[%s433] sm:$0xf] %vm340, %v431
        %435 = vrot.lane.b32.xlu0 %v339, 112
        %v436 = vpop.permute.xlu0 %435
        %s438 = scalar_lea.vmem %s283, 8 [#allocation7]
        %439 = vst.msk [vmem:[%s438] sm:$0xf] %vm340, %v436
        %440 = vrot.lane.b32.xlu0 %v335, 80
        %v441 = vpop.permute.xlu0 %440
        %443 = vxpose.xlu0.b32.start [1/16] %v441, 128
        %444 = vxpose.xlu0.b32.cont [2/16] 0.0, 128
        %445 = vxpose.xlu0.b32.cont [3/16] 0.0, 128
        %446 = vxpose.xlu0.b32.cont [4/16] 0.0, 128
        %447 = vxpose.xlu0.b32.cont [5/16] 0.0, 128
        %448 = vxpose.xlu0.b32.cont [6/16] 0.0, 128
        %449 = vxpose.xlu0.b32.cont [7/16] 0.0, 128
        %450 = vxpose.xlu0.b32.cont [8/16] 0.0, 128
        %451 = vxpose.xlu0.b32.cont [9/16] 0.0, 128
        %452 = vxpose.xlu0.b32.cont [10/16] 0.0, 128
        %453 = vxpose.xlu0.b32.cont [11/16] 0.0, 128
        %454 = vxpose.xlu0.b32.cont [12/16] 0.0, 128
        %455 = vxpose.xlu0.b32.cont [13/16] 0.0, 128
        %456 = vxpose.xlu0.b32.cont [14/16] 0.0, 128
        %457 = vxpose.xlu0.b32.cont [15/16] 0.0, 128
        %458 = vxpose.xlu0.b32.end [16/16] 0.0, 128
        %v459 = vpop.trf.xlu0
        %v460 = vpop.trf.xlu0
        %v461 = vpop.trf.xlu0
        %v462 = vpop.trf.xlu0
        %v463 = vpop.trf.xlu0
        %v464 = vpop.trf.xlu0
        %v465 = vpop.trf.xlu0
        %v466 = vpop.trf.xlu0
        %v467 = vpop.trf.xlu0
        %v468 = vpop.trf.xlu0
        %v469 = vpop.trf.xlu0
        %v470 = vpop.trf.xlu0
        %v471 = vpop.trf.xlu0
        %v472 = vpop.trf.xlu0
        %v473 = vpop.trf.xlu0
        %v474 = vpop.trf.xlu0
        %v475 = vpack.c.bf16 %v459, %v459
        %s476 = scalar_lea.vmem %s290, 8 [#allocation8]
        %477 = vst.msk [vmem:[%s476] sm:$0xf] %vm340, %v475
        %478 = vrot.lane.b32.xlu0 %v380, 48
        %v479 = vpop.permute.xlu0 %478
        %s481 = scalar_lea.vmem %s297, 8 [#allocation10]
        %482 = vst.msk [vmem:[%s481] sm:$0xf] %vm340, %v479
        %483 = vrot.lane.b32.xlu0 %v339, 104
        %v484 = vpop.permute.xlu0 %483
        %s486 = scalar_lea.vmem %s283, 12 [#allocation7]
        %487 = vst.msk [vmem:[%s486] sm:$0xf] %vm340, %v484
        %488 = vrot.lane.b32.xlu0 %v335, 72
        %v489 = vpop.permute.xlu0 %488
        %491 = vxpose.xlu0.b32.start [1/16] %v489, 128
        %492 = vxpose.xlu0.b32.cont [2/16] 0.0, 128
        %493 = vxpose.xlu0.b32.cont [3/16] 0.0, 128
        %494 = vxpose.xlu0.b32.cont [4/16] 0.0, 128
        %495 = vxpose.xlu0.b32.cont [5/16] 0.0, 128
        %496 = vxpose.xlu0.b32.cont [6/16] 0.0, 128
        %497 = vxpose.xlu0.b32.cont [7/16] 0.0, 128
        %498 = vxpose.xlu0.b32.cont [8/16] 0.0, 128
        %499 = vxpose.xlu0.b32.cont [9/16] 0.0, 128
        %500 = vxpose.xlu0.b32.cont [10/16] 0.0, 128
        %501 = vxpose.xlu0.b32.cont [11/16] 0.0, 128
        %502 = vxpose.xlu0.b32.cont [12/16] 0.0, 128
        %503 = vxpose.xlu0.b32.cont [13/16] 0.0, 128
        %504 = vxpose.xlu0.b32.cont [14/16] 0.0, 128
        %505 = vxpose.xlu0.b32.cont [15/16] 0.0, 128
        %506 = vxpose.xlu0.b32.end [16/16] 0.0, 128
        %v507 = vpop.trf.xlu0
        %v508 = vpop.trf.xlu0
        %v509 = vpop.trf.xlu0
        %v510 = vpop.trf.xlu0
        %v511 = vpop.trf.xlu0
        %v512 = vpop.trf.xlu0
        %v513 = vpop.trf.xlu0
        %v514 = vpop.trf.xlu0
        %v515 = vpop.trf.xlu0
        %v516 = vpop.trf.xlu0
        %v517 = vpop.trf.xlu0
        %v518 = vpop.trf.xlu0
        %v519 = vpop.trf.xlu0
        %v520 = vpop.trf.xlu0
        %v521 = vpop.trf.xlu0
        %v522 = vpop.trf.xlu0
        %v523 = vpack.c.bf16 %v507, %v507
        %s524 = scalar_lea.vmem %s290, 12 [#allocation8]
        %525 = vst.msk [vmem:[%s524] sm:$0xf] %vm340, %v523
        %526 = vrot.lane.b32.xlu0 %v380, 40
        %v527 = vpop.permute.xlu0 %526
        %s529 = scalar_lea.vmem %s297, 12 [#allocation10]
        %530 = vst.msk [vmem:[%s529] sm:$0xf] %vm340, %v527
        %s531 = sand.u32 %s119, 1
        %s532 = scalar_lea.sflag [#allocation4], %s531
        %s533 = sand.u32 %s119, 1
        %s534 = smul.addr %s533, 16
        %s535 = scalar_lea.vmem [#allocation7], %s534
        %s536 = sand.u32 %s27, 1
        %s537 = scalar_lea.sflag [#allocation9], %s536
        %s538 = sand.u32 %s147, 1
        %s539 = smul.addr %s538, 16
        %s540 = scalar_lea.vmem [#allocation8], %s539
        %s541 = sand.u32 %s27, 1
        %s542 = scalar_lea.sflag [#allocation9], %s541
        %s543 = sand.u32 %s175, 1
        %s544 = smul.addr %s543, 16
        %s545 = scalar_lea.vmem [#allocation10], %s544
        // Predicated region
        $region41: #{tpu_custom_call.1} parent=31 // pred_check
          %p546 = pneg %p129
        $region42: #{tpu_custom_call.1} parent=31 // pred_check_branch
          %548 = sbr.rel (%p546) target = $region44
        $region43: #{tpu_custom_call.1} parent=31 // pred_region
          %550 = vsyncadd %s532, 0
          %s551 = smul.addr %s31, 4
          %s552 = sadd.s32 %s32, %s551
          %s553 = smul.addr %s552, 4
          %s554 = scalar_lea.hbm %s3, %s553
          %s555 = sshll.u32 %s535, 4
          %s556 = int_to_ptr.vmem [resolvable:$true] %s555
          %s557 = sshll.u32 %s554, 4
          %s558 = int_to_ptr.hbm [resolvable:$true] %s557
          %563 = dma.vmem_to_hbm [thread:$0]  %s556, 256, %s558, %s532, 64, 64, 4
        $region44: #{tpu_custom_call.1} parent=31 // pred_fallthru
          _
        // Predicated region
        $region45: #{tpu_custom_call.1} parent=31 // pred_check
          %p564 = pneg %p157
        $region46: #{tpu_custom_call.1} parent=31 // pred_check_branch
          %566 = sbr.rel (%p564) target = $region48
        $region47: #{tpu_custom_call.1} parent=31 // pred_region
          %568 = vsyncadd %s537, 0
          %s569 = smul.addr %s31, 4
          %s570 = sadd.s32 %s32, %s569
          %s571 = smul.addr %s570, 4
          %s572 = scalar_lea.hbm %s4, %s571
          %s573 = sshll.u32 %s540, 4
          %s574 = int_to_ptr.vmem [resolvable:$true] %s573
          %s575 = sshll.u32 %s572, 4
          %s576 = int_to_ptr.hbm [resolvable:$true] %s575
          %581 = dma.vmem_to_hbm [thread:$0]  %s574, 256, %s576, %s537, 64, 64, 4
        $region48: #{tpu_custom_call.1} parent=31 // pred_fallthru
          _
        // Predicated region
        $region49: #{tpu_custom_call.1} parent=31 // pred_check
          %p582 = pneg %p185
        $region50: #{tpu_custom_call.1} parent=31 // pred_check_branch
          %584 = sbr.rel (%p582) target = $region52
        $region51: #{tpu_custom_call.1} parent=31 // pred_region
          %586 = vsyncadd %s542, 0
          %s587 = smul.addr %s31, 4
          %s588 = sadd.s32 %s32, %s587
          %s589 = smul.addr %s588, 4
          %s590 = scalar_lea.hbm %s5, %s589
          %s591 = sshll.u32 %s545, 4
          %s592 = int_to_ptr.vmem [resolvable:$true] %s591
          %s593 = sshll.u32 %s590, 4
          %s594 = int_to_ptr.hbm [resolvable:$true] %s593
          %599 = dma.vmem_to_hbm [thread:$0]  %s592, 256, %s594, %s542, 64, 64, 4
        $region52: #{tpu_custom_call.1} parent=31 // pred_fallthru
          _
      $region32: #{tpu_custom_call.1} parent=5 // pred_fallthru
        _
      %p600 = scmp.le.s32.totalorder 2, %s22
      // Predicated region
      $region53: #{tpu_custom_call.1} parent=5 // pred_check
        %p601 = pneg %p600
      $region54: #{tpu_custom_call.1} parent=5 // pred_check_branch
        %603 = sbr.rel (%p601) target = $region56
      $region55: #{tpu_custom_call.1} parent=5 // pred_region
        %s604 = ssub.s32 %s22, 2
        // Predicated region
        $region57: #{tpu_custom_call.1} parent=55 // pred_check
          %p605 = pneg %p135
        $region58: #{tpu_custom_call.1} parent=55 // pred_check_branch
          %607 = sbr.rel (%p605) target = $region60
        $region59: #{tpu_custom_call.1} parent=55 // pred_region
          %s608 = sand.u32 %s120, 1
          %s609 = scalar_lea.sflag [#allocation4], %s608
          %s610 = sand.u32 %s120, 1
          %s611 = smul.addr %s610, 16
          %s612 = scalar_lea.vmem [#allocation7], %s611
          %614 = dma.done %s609, 256
        $region60: #{tpu_custom_call.1} parent=55 // pred_fallthru
          _
        // Predicated region
        $region61: #{tpu_custom_call.1} parent=55 // pred_check
          %p615 = pneg %p163
        $region62: #{tpu_custom_call.1} parent=55 // pred_check_branch
          %617 = sbr.rel (%p615) target = $region64
        $region63: #{tpu_custom_call.1} parent=55 // pred_region
          %s618 = sand.u32 %s28, 1
          %s619 = scalar_lea.sflag [#allocation9], %s618
          %s620 = sand.u32 %s148, 1
          %s621 = smul.addr %s620, 16
          %s622 = scalar_lea.vmem [#allocation8], %s621
          %624 = dma.done %s619, 256
        $region64: #{tpu_custom_call.1} parent=55 // pred_fallthru
          _
        // Predicated region
        $region65: #{tpu_custom_call.1} parent=55 // pred_check
          %p625 = pneg %p191
        $region66: #{tpu_custom_call.1} parent=55 // pred_check_branch
          %627 = sbr.rel (%p625) target = $region68
        $region67: #{tpu_custom_call.1} parent=55 // pred_region
          %s628 = sand.u32 %s28, 1
          %s629 = scalar_lea.sflag [#allocation9], %s628
          %s630 = sand.u32 %s176, 1
          %s631 = smul.addr %s630, 16
          %s632 = scalar_lea.vmem [#allocation10], %s631
          %634 = dma.done %s629, 256
        $region68: #{tpu_custom_call.1} parent=55 // pred_fallthru
          _
      $region56: #{tpu_custom_call.1} parent=5 // pred_fallthru
        _
    $region6: #{tpu_custom_call.1} parent=1 // loop_footer
      %s26 = sadd.s32 1, %s22
    $region7: #{tpu_custom_call.1} parent=1 // loop_footer_branch
      %21 = sbr.rel target = $region3
    $region8: #{tpu_custom_call.1} parent=1 // loop_exit
      _
    %635 = vsyncpa [#allocation3], 1
    %s636 = scalar_lea.sflag [#allocation3], 1
    %637 = vsyncpa %s636, 1
    %638 = vsyncpa [#allocation6], 1
    %639 = vsyncpa [#allocation4], 1
    %s640 = scalar_lea.sflag [#allocation4], 1
    %641 = vsyncpa %s640, 1
    %642 = vsyncpa [#allocation9], 1
    %s643 = scalar_lea.sflag [#allocation9], 1
    %644 = vsyncpa %s643, 1

</llo_original>
